<compile_context>
chip_gen: v5e
topology: v5e:2x2
jax: 0.10.0
libtpu: 0.0.40
codegen_flags: <defaults>
</compile_context>

<pallas_src>
import math

import jax
import jax.numpy as jnp
from jax.experimental import pallas as pl
from jax.experimental.pallas import tpu as pltpu


def _attend(q, k, v, m_bits, pval_ref, pattn_ref):
    """Shared body: q (TQ, D), k/v (Lk, D), m_bits int8 broadcastable to (TQ, Lk)."""
    inv_sqrt_d = 1.0 / math.sqrt(q.shape[-1])

    # scores[t, s] = sum_d q[t, d] * k[s, d]  (contract last dims -> MXU, no transpose)
    scores = jax.lax.dot_general(
        q, k, (((1,), (1,)), ((), ())),
        preferred_element_type=jnp.float32) * inv_sqrt_d

    if m_bits is not None:
        # torch masked_fill_(m, -1e9); m_bits broadcasts over (TQ, Lk).
        scores = jnp.where(m_bits != 0, jnp.float32(-1000000000.0), scores)

    # Numerically stable softmax over the key axis.
    s_max = jnp.max(scores, axis=-1, keepdims=True)
    e = jnp.exp(scores - s_max)
    p = e / jnp.sum(e, axis=-1, keepdims=True)

    # TODO(synk): training-mode dropout (p=0.1) would need pltpu.prng_*; eval-mode
    # dropout is the identity and is what is implemented here.

    pattn_ref[...] = p.astype(pattn_ref.dtype)
    pval_ref[...] = jnp.dot(
        p.astype(v.dtype), v, preferred_element_type=jnp.float32
    ).astype(pval_ref.dtype)


def _attention_kernel_masked(q_ref, k_ref, v_ref, m_ref, pval_ref, pattn_ref):
    _attend(q_ref[...], k_ref[...], v_ref[...], m_ref[...], pval_ref, pattn_ref)


def _attention_kernel_nomask(q_ref, k_ref, v_ref, pval_ref, pattn_ref):
    _attend(q_ref[...], k_ref[...], v_ref[...], None, pval_ref, pattn_ref)


def _pick_q_tile(lq):
    # MXU-aligned query tiles when the sequence allows; full block otherwise
    # (full-extent blocks are always layout-legal).
    if lq % 256 == 0:
        return 256
    if lq % 128 == 0:
        return 128
    return lq


def attention(query, key, value, m=None):
    """query/key/value: (B, H, L, D).  Returns (p_val, p_attn) like the nn.Module."""
    B, H, Lq, D = query.shape
    Lk = key.shape[2]

    TQ = _pick_q_tile(Lq)
    n_q = Lq // TQ
    grid = (B, H, n_q)

    q_spec = pl.BlockSpec((pl.Squeezed(), pl.Squeezed(), TQ, D),
                          lambda b, h, qi: (b, h, qi, 0))
    kv_spec = pl.BlockSpec((pl.Squeezed(), pl.Squeezed(), Lk, D),
                           lambda b, h, qi: (b, h, 0, 0))
    pval_spec = pl.BlockSpec((pl.Squeezed(), pl.Squeezed(), TQ, D),
                             lambda b, h, qi: (b, h, qi, 0))
    pattn_spec = pl.BlockSpec((pl.Squeezed(), pl.Squeezed(), TQ, Lk),
                              lambda b, h, qi: (b, h, qi, 0))

    in_specs = [q_spec, kv_spec, kv_spec]
    inputs = [query, key, value]
    kernel = _attention_kernel_nomask
    mask_bytes = 0

    if m is not None:
        # Normalize mask to 4-D int8 (nonzero = masked); keep broadcast dims as 1
        # and express the broadcast through the index_map (no HBM materialization).
        m4 = (jnp.asarray(m) != 0).astype(jnp.int8)
        while m4.ndim < 4:
            m4 = m4[None]
        Bm, Hm, Lqm, Lkm = m4.shape
        assert Bm in (1, B) and Hm in (1, H) and Lqm in (1, Lq) and Lkm in (1, Lk), \
            "mask must be broadcastable against the scores tensor"

        mq_blk = TQ if Lqm == Lq else 1
        mk_blk = Lk if Lkm == Lk else 1

        def m_index(b, h, qi, _Bm=Bm, _Hm=Hm, _Lqm=Lqm):
            return (b if _Bm == B else 0,
                    h if _Hm == H else 0,
                    qi if _Lqm == Lq else 0,
                    0)

        m_spec = pl.BlockSpec((pl.Squeezed(), pl.Squeezed(), mq_blk, mk_blk), m_index)
        in_specs.append(m_spec)
        inputs.append(m4)
        kernel = _attention_kernel_masked
        mask_bytes = int(m4.size)  # int8

    grid_spec = pltpu.PrefetchScalarGridSpec(
        num_scalar_prefetch=0,
        grid=grid,
        in_specs=in_specs,
        out_specs=[pval_spec, pattn_spec],
    )

    itemsize = query.dtype.itemsize
    flops = int(4 * B * H * Lq * Lk * D)  # QK^T + PV
    bytes_accessed = int(itemsize * (query.size + key.size + value.size
                                     + B * H * Lq * D + B * H * Lq * Lk)
                         + mask_bytes)
    cost = pl.CostEstimate(flops=flops,
                           transcendentals=int(B * H * Lq * Lk),
                           bytes_accessed=bytes_accessed)

    p_val, p_attn = pl.pallas_call(
        kernel,
        out_shape=(jax.ShapeDtypeStruct((B, H, Lq, D), query.dtype),
                   jax.ShapeDtypeStruct((B, H, Lq, Lk), query.dtype)),
        grid_spec=grid_spec,
        compiler_params=pltpu.CompilerParams(
            dimension_semantics=("parallel", "parallel", "parallel")),
        cost_estimate=cost,
    )(*inputs)

    return p_val, p_attn


if __name__ == "__main__":
    key0 = jax.random.PRNGKey(0)
    kq, kk, kv = jax.random.split(key0, 3)

    B, H, L, D = 2, 4, 8, 32
    query = jax.random.normal(kq, (B, H, L, D), dtype=jnp.float32)
    key_ = jax.random.normal(kk, (B, H, L, D), dtype=jnp.float32)
    value = jax.random.normal(kv, (B, H, L, D), dtype=jnp.float32)

    # Causal mask (True = masked), shared across batch/heads (broadcast in index_map).
    causal = jnp.triu(jnp.ones((L, L), jnp.int32), k=1).astype(jnp.bool_)[None, None]

    # Per-batch key-padding mask (B, 1, 1, L) to exercise q/k broadcast paths.
    pad = (jnp.arange(L)[None, :] >= jnp.array([L, L - 2])[:, None])[:, None, None, :]

    # Pure-JAX reference (eval-mode dropout = identity).
    def ref_attention(q, k, v, m):
        scores = jnp.einsum("bhqd,bhkd->bhqk", q, k,
                            precision=jax.lax.Precision.HIGHEST) / math.sqrt(q.shape[-1])
        if m is not None:
            scores = jnp.where(m, -1000000000.0, scores)
        pa = jax.nn.softmax(scores, axis=-1)
        pv = jnp.einsum("bhqk,bhkd->bhqd", pa, v,
                        precision=jax.lax.Precision.HIGHEST)
        return pv, pa

    # Masked path (shared causal mask).
    p_val, p_attn = attention(query, key_, value, m=causal)
    p_val = jax.block_until_ready(p_val)
    p_attn = jax.block_until_ready(p_attn)
    pv_ref, pa_ref = ref_attention(query, key_, value, causal)
    assert p_val.shape == (B, H, L, D) and p_attn.shape == (B, H, L, L)
    assert jnp.allclose(p_val, pv_ref, atol=1e-4, rtol=1e-4)
    assert jnp.allclose(p_attn, pa_ref, atol=1e-4, rtol=1e-4)

    # Masked path (per-batch key-padding mask, broadcast over heads and queries).
    p_val1, p_attn1 = attention(query, key_, value, m=pad)
    p_val1 = jax.block_until_ready(p_val1)
    pv_ref1, pa_ref1 = ref_attention(query, key_, value, pad)
    assert jnp.allclose(p_val1, pv_ref1, atol=1e-4, rtol=1e-4)
    assert jnp.allclose(p_attn1, pa_ref1, atol=1e-4, rtol=1e-4)

    # Unmasked path (m=None, no mask traffic at all).
    p_val2, p_attn2 = attention(query, key_, value, m=None)
    p_val2 = jax.block_until_ready(p_val2)
    pv_ref2, pa_ref2 = ref_attention(query, key_, value, None)
    assert jnp.allclose(p_val2, pv_ref2, atol=1e-4, rtol=1e-4)
    assert jnp.allclose(p_attn2, pa_ref2, atol=1e-4, rtol=1e-4)

    print("KERNEL_OK")
</pallas_src>

<mosaic_0001>
module attributes {stable_mosaic.version = 11 : i64} {
  func.func @_attention_kernel_masked(%arg0: i32, %arg1: i32, %arg2: i32, %arg3: memref<1x1x8x32xf32, #tpu.memory_space<vmem>>, %arg4: memref<1x1x8x32xf32, #tpu.memory_space<vmem>>, %arg5: memref<1x1x8x32xf32, #tpu.memory_space<vmem>>, %arg6: memref<1x1x8x8xi8, #tpu.memory_space<vmem>>, %arg7: memref<1x1x8x32xf32, #tpu.memory_space<vmem>>, %arg8: memref<1x1x8x8xf32, #tpu.memory_space<vmem>>) attributes {dimension_semantics = [#tpu.dimension_semantics<parallel>, #tpu.dimension_semantics<parallel>, #tpu.dimension_semantics<parallel>], iteration_bounds = array<i64: 2, 4, 1>, scalar_prefetch = 0 : i64, scratch_operands = 0 : i64, tpu.core_type = #tpu.core_type<tc>, window_params = [{transform_indices = @transform_0, window_bounds = array<i64: 1, 1, 8, 32>}, {transform_indices = @transform_1, window_bounds = array<i64: 1, 1, 8, 32>}, {transform_indices = @transform_2, window_bounds = array<i64: 1, 1, 8, 32>}, {transform_indices = @transform_3, window_bounds = array<i64: 1, 1, 8, 8>}, {transform_indices = @transform_4, window_bounds = array<i64: 1, 1, 8, 32>}, {transform_indices = @transform_5, window_bounds = array<i64: 1, 1, 8, 8>}]} {
    %c0 = arith.constant 0 : index
    %c0_0 = arith.constant 0 : index
    %c0_1 = arith.constant 0 : index
    %c0_2 = arith.constant 0 : index
    %0 = vector.load %arg3[%c0, %c0_0, %c0_1, %c0_2] : memref<1x1x8x32xf32, #tpu.memory_space<vmem>>, vector<1x1x8x32xf32>
    %1 = vector.shape_cast %0 : vector<1x1x8x32xf32> to vector<8x32xf32>
    %c0_3 = arith.constant 0 : index
    %c0_4 = arith.constant 0 : index
    %c0_5 = arith.constant 0 : index
    %c0_6 = arith.constant 0 : index
    %2 = vector.load %arg4[%c0_3, %c0_4, %c0_5, %c0_6] : memref<1x1x8x32xf32, #tpu.memory_space<vmem>>, vector<1x1x8x32xf32>
    %3 = vector.shape_cast %2 : vector<1x1x8x32xf32> to vector<8x32xf32>
    %c0_7 = arith.constant 0 : index
    %c0_8 = arith.constant 0 : index
    %c0_9 = arith.constant 0 : index
    %c0_10 = arith.constant 0 : index
    %4 = vector.load %arg5[%c0_7, %c0_8, %c0_9, %c0_10] : memref<1x1x8x32xf32, #tpu.memory_space<vmem>>, vector<1x1x8x32xf32>
    %5 = vector.shape_cast %4 : vector<1x1x8x32xf32> to vector<8x32xf32>
    %c0_11 = arith.constant 0 : index
    %c0_12 = arith.constant 0 : index
    %c0_13 = arith.constant 0 : index
    %c0_14 = arith.constant 0 : index
    %6 = vector.load %arg6[%c0_11, %c0_12, %c0_13, %c0_14] : memref<1x1x8x8xi8, #tpu.memory_space<vmem>>, vector<1x1x8x8xi8>
    %7 = vector.shape_cast %6 : vector<1x1x8x8xi8> to vector<8x8xi8>
    %cst = arith.constant dense<0.000000e+00> : vector<8x8xf32>
    %8 = tpu.matmul %1, %3, %cst {dimension_numbers = #tpu.dot_dimension_numbers<[1], [1], [0], [0], [0, 0, 1, 0], [], []>} : vector<8x32xf32>, vector<8x32xf32>, vector<8x8xf32> -> vector<8x8xf32>
    %cst_15 = arith.constant 0.176776692 : f32
    %9 = vector.broadcast %cst_15 : f32 to vector<8x8xf32>
    %10 = arith.mulf %8, %9 : vector<8x8xf32>
    %c0_i8 = arith.constant 0 : i8
    %11 = vector.broadcast %c0_i8 : i8 to vector<8x8xi8>
    %12 = arith.cmpi ne, %7, %11 : vector<8x8xi8>
    %cst_16 = arith.constant -1.000000e+09 : f32
    %13 = vector.broadcast %cst_16 : f32 to vector<8x8xf32>
    %14 = arith.select %12, %13, %10 : vector<8x8xi1>, vector<8x8xf32>
    %cst_17 = arith.constant dense<0xFF800000> : vector<8xf32>
    %15 = vector.multi_reduction <maximumf>, %14, %cst_17 [1] : vector<8x8xf32> to vector<8xf32>
    %16 = vector.shape_cast %15 : vector<8xf32> to vector<8x1xf32>
    %17 = vector.broadcast %16 : vector<8x1xf32> to vector<8x8xf32>
    %18 = arith.subf %14, %17 : vector<8x8xf32>
    %19 = math.exp %18 : vector<8x8xf32>
    %cst_18 = arith.constant dense<0.000000e+00> : vector<8xf32>
    %20 = vector.multi_reduction <add>, %19, %cst_18 [1] : vector<8x8xf32> to vector<8xf32>
    %21 = vector.shape_cast %20 : vector<8xf32> to vector<8x1xf32>
    %22 = vector.broadcast %21 : vector<8x1xf32> to vector<8x8xf32>
    %23 = arith.divf %19, %22 : vector<8x8xf32>
    %c0_19 = arith.constant 0 : index
    %c0_20 = arith.constant 0 : index
    %c0_21 = arith.constant 0 : index
    %c0_22 = arith.constant 0 : index
    %24 = vector.load %arg8[%c0_19, %c0_20, %c0_21, %c0_22] : memref<1x1x8x8xf32, #tpu.memory_space<vmem>>, vector<1x1x8x8xf32>
    %25 = vector.shape_cast %24 : vector<1x1x8x8xf32> to vector<8x8xf32>
    %26 = vector.shape_cast %23 : vector<8x8xf32> to vector<1x1x8x8xf32>
    tpu.vector_store %arg8[%c0_19, %c0_20, %c0_21, %c0_22], %26 {strides = array<i32>} : memref<1x1x8x8xf32, #tpu.memory_space<vmem>>, vector<1x1x8x8xf32>,
    %cst_23 = arith.constant dense<0.000000e+00> : vector<8x32xf32>
    %27 = tpu.matmul %23, %5, %cst_23 {dimension_numbers = #tpu.dot_dimension_numbers<[1], [0], [0], [1], [0, 0, 1, 1], [], []>} : vector<8x8xf32>, vector<8x32xf32>, vector<8x32xf32> -> vector<8x32xf32>
    %c0_24 = arith.constant 0 : index
    %c0_25 = arith.constant 0 : index
    %c0_26 = arith.constant 0 : index
    %c0_27 = arith.constant 0 : index
    %28 = vector.load %arg7[%c0_24, %c0_25, %c0_26, %c0_27] : memref<1x1x8x32xf32, #tpu.memory_space<vmem>>, vector<1x1x8x32xf32>
    %29 = vector.shape_cast %28 : vector<1x1x8x32xf32> to vector<8x32xf32>
    %30 = vector.shape_cast %27 : vector<8x32xf32> to vector<1x1x8x32xf32>
    tpu.vector_store %arg7[%c0_24, %c0_25, %c0_26, %c0_27], %30 {strides = array<i32>} : memref<1x1x8x32xf32, #tpu.memory_space<vmem>>, vector<1x1x8x32xf32>,
    return
  }
  func.func @transform_0(%arg0: i32, %arg1: i32, %arg2: i32) -> (i32, i32, i32, i32) {
    %c0_i32 = arith.constant 0 : i32
    %c0_i32_0 = arith.constant 0 : i32
    return %arg0, %arg1, %arg2, %c0_i32 : i32, i32, i32, i32
  }
  func.func @transform_1(%arg0: i32, %arg1: i32, %arg2: i32) -> (i32, i32, i32, i32) {
    %c0_i32 = arith.constant 0 : i32
    %c0_i32_0 = arith.constant 0 : i32
    %c0_i32_1 = arith.constant 0 : i32
    return %arg0, %arg1, %c0_i32, %c0_i32_0 : i32, i32, i32, i32
  }
  func.func @transform_2(%arg0: i32, %arg1: i32, %arg2: i32) -> (i32, i32, i32, i32) {
    %c0_i32 = arith.constant 0 : i32
    %c0_i32_0 = arith.constant 0 : i32
    %c0_i32_1 = arith.constant 0 : i32
    return %arg0, %arg1, %c0_i32, %c0_i32_0 : i32, i32, i32, i32
  }
  func.func @transform_3(%arg0: i32, %arg1: i32, %arg2: i32) -> (i32, i32, i32, i32) {
    %c0_i32 = arith.constant 0 : i32
    %c0_i32_0 = arith.constant 0 : i32
    %c0_i32_1 = arith.constant 0 : i32
    %c0_i32_2 = arith.constant 0 : i32
    return %c0_i32, %c0_i32_0, %arg2, %c0_i32_1 : i32, i32, i32, i32
  }
  func.func @transform_4(%arg0: i32, %arg1: i32, %arg2: i32) -> (i32, i32, i32, i32) {
    %c0_i32 = arith.constant 0 : i32
    %c0_i32_0 = arith.constant 0 : i32
    return %arg0, %arg1, %arg2, %c0_i32 : i32, i32, i32, i32
  }
  func.func @transform_5(%arg0: i32, %arg1: i32, %arg2: i32) -> (i32, i32, i32, i32) {
    %c0_i32 = arith.constant 0 : i32
    %c0_i32_0 = arith.constant 0 : i32
    return %arg0, %arg1, %arg2, %c0_i32 : i32, i32, i32, i32
  }
}

</mosaic_0001>

<llo_original>
// kernel: tpu_custom_call.1
$region0: #{tpu_custom_call.1}
  #allocation0 [shape = 'u32[]', space=smem, size = 0x4, offset = 0x4, fixed_abs, tag = 'smem constant byte address 0x4 - core index']
  #allocation1 [shape = 'u32[72,128]{1,0:T(1,128)}', space=vmem, size = 0x9000, scoped, tag = 'internal scratch']
  %s0 = inlined_call_operand.hbm [shape: f32[2,4,8,32], index: 0, kind: input, shape index: {}]
  %s1 = inlined_call_operand.hbm [shape: f32[2,4,8,32], index: 1, kind: input, shape index: {}]
  %s2 = inlined_call_operand.hbm [shape: f32[2,4,8,32], index: 2, kind: input, shape index: {}]
  %s3 = inlined_call_operand.vmem [shape: s8[1,1,8,8], index: 3, kind: input, shape index: {}]
  %s4 = inlined_call_operand.hbm [shape: f32[2,4,8,32], index: 4, kind: output, shape index: {0}]
  %s5 = inlined_call_operand.hbm [shape: f32[2,4,8,8], index: 5, kind: output, shape index: {1}]
  %6 = xla_tuple %s4, %s5
  %s7 = sld [smem:[#allocation0]]
  $region69: #{tpu_custom_call.1} parent=0
    _
  %s9 = ssub.s32 1, %s7
  %s10 = scalar_select 0, %s9, %s7
  $region1: #{tpu_custom_call.1} parent=0
    #allocation2 [shape = 'u8[8192]{0}', space=vmem, size = 0x2000, scoped, tag = 'input window, operand 0']
    #allocation3 [shape = 's32[2]{0}', space=sflag, size = 0x8, scoped, tag = 'scoped memory for tpu_custom_call.1']
    #allocation4 [shape = 's32[2]{0}', space=sflag, size = 0x8, scoped, tag = 'scoped memory for tpu_custom_call.1']
    #allocation5 [shape = 'u8[8192]{0}', space=vmem, size = 0x2000, scoped, tag = 'input window, operand 1']
    #allocation6 [shape = 's32[2]{0}', space=sflag, size = 0x8, scoped, tag = 'scoped memory for tpu_custom_call.1']
    #allocation7 [shape = 'u8[8192]{0}', space=vmem, size = 0x2000, scoped, tag = 'input window, operand 2']
    #allocation8 [shape = 'u8[8192]{0}', space=vmem, size = 0x2000, scoped, tag = 'output window, operand 0']
    #allocation9 [shape = 'u8[8192]{0}', space=vmem, size = 0x2000, scoped, tag = 'output window, operand 1']
    #allocation10 [shape = 's32[2]{0}', space=sflag, size = 0x8, scoped, tag = 'scoped memory for tpu_custom_call.1']
    %11 = vsyncpa [#allocation3], 0
    %s12 = scalar_lea.sflag [#allocation3], 1
    %13 = vsyncpa %s12, 0
    %14 = vsyncpa [#allocation6], 0
    %s15 = scalar_lea.sflag [#allocation6], 1
    %16 = vsyncpa %s15, 0
    %17 = vsyncpa [#allocation4], 0
    %s18 = scalar_lea.sflag [#allocation4], 1
    %19 = vsyncpa %s18, 0
    %20 = vsyncpa [#allocation10], 0
    %s21 = scalar_lea.sflag [#allocation10], 1
    %22 = vsyncpa %s21, 0
    loop: start=0, step=1, limit=10
    $region2: #{tpu_custom_call.1} parent=1 // loop_pre_header
      _
    $region3: #{tpu_custom_call.1} parent=1 // loop_header
      %s24 = sphi 0, %s28
      %p25 = scmp.ge.s32.totalorder %s24, 10
      %s31 = sphi 0, %s50
      %s32 = sphi 0, %s46
      %s33 = sphi 0, %s42
      %s34 = sphi 0, %s31
      %s35 = sphi 0, %s32
      %s36 = sphi 0, %s33
      %s37 = sphi 0, %s34
      %s38 = sphi 0, %s35
      %s39 = sphi 0, %s36
      %s57 = sphi 0, %s59
      %s60 = sphi 0, %s57
      %s61 = sphi 0, %s60
      %s77 = sphi 0, %s61
      %s85 = sphi 0, %s87
      %s88 = sphi 0, %s85
      %s89 = sphi 0, %s88
      %s105 = sphi 0, %s89
      %s113 = sphi 0, %s115
      %s116 = sphi 0, %s113
      %s117 = sphi 0, %s116
      %s133 = sphi 0, %s117
      %s139 = sphi 0, %s141
      %s142 = sphi 0, %s139
      %s143 = sphi 0, %s142
      %s159 = sphi 0, %s143
      %s169 = sphi 0, %s171
      %s172 = sphi 0, %s169
      %s173 = sphi 0, %s172
      %s189 = sphi 0, %s173
      %s199 = sphi 0, %s201
      %s202 = sphi 0, %s199
      %s203 = sphi 0, %s202
      %s219 = sphi 0, %s203
    $region4: #{tpu_custom_call.1} parent=1 // loop_header_branch
      %27 = sbr.rel (%p25) target = $region8
    $region5: #{tpu_custom_call.1} parent=1 // loop_body
      %s29 = ssub.s32 %s24, 1
      %s30 = ssub.s32 %s24, 2
      %s40 = sadd.s32 1, %s33
      %p41 = scmp.ge.s32.totalorder %s40, 1
      %s42 = scalar_select %p41, 0, %s40
      %s43 = sadd.s32 1, %s32
      %s44 = scalar_select %p41, %s43, %s32
      %p45 = scmp.ge.s32.totalorder %s44, 4
      %s46 = scalar_select %p45, 0, %s44
      %s47 = sadd.s32 1, %s31
      %s48 = scalar_select %p45, %s47, %s31
      %p49 = scmp.ge.s32.totalorder %s48, 2
      %s50 = scalar_select %p49, 0, %s48
      %s51 = ssub.s32 %s31, %s50
      %s52 = ssub.s32 %s32, %s46
      %s53 = sor.u32 %s51, %s52
      %s54 = ssub.s32 %s33, %s42
      %s55 = sor.u32 %s53, %s54
      %p56 = scmp.eq.s32.totalorder %s55, 0
      %s58 = sadd.s32 %s57, 1
      %s59 = scalar_select %p56, %s57, %s58
      %p62 = pneg %p56
      %p63 = scmp.eq.s32.totalorder %s24, 7
      %p64 = por %p62, %p63
      %p65 = scmp.ne.s32.totalorder %s57, %s60
      %p66 = scmp.eq.s32.totalorder %s24, 0
      %p67 = por %p65, %p66
      %p68 = scmp.ne.s32.totalorder %s57, %s60
      %p69 = scmp.eq.s32.totalorder %s29, 7
      %p70 = por %p68, %p69
      %p71 = scmp.ne.s32.totalorder %s60, %s61
      %p72 = scmp.eq.s32.totalorder %s29, 0
      %p73 = por %p71, %p72
      %p74 = scmp.ne.s32.totalorder %s60, %s61
      %p75 = scmp.eq.s32.totalorder %s30, 7
      %p76 = por %p74, %p75
      %p78 = scmp.ne.s32.totalorder %s61, %s77
      %p79 = scmp.eq.s32.totalorder %s30, 0
      %p80 = por %p78, %p79
      %s81 = ssub.s32 %s31, %s50
      %s82 = ssub.s32 %s32, %s46
      %s83 = sor.u32 %s81, %s82
      %p84 = scmp.eq.s32.totalorder %s83, 0
      %s86 = sadd.s32 %s85, 1
      %s87 = scalar_select %p84, %s85, %s86
      %p90 = pneg %p84
      %p91 = scmp.eq.s32.totalorder %s24, 7
      %p92 = por %p90, %p91
      %p93 = scmp.ne.s32.totalorder %s85, %s88
      %p94 = scmp.eq.s32.totalorder %s24, 0
      %p95 = por %p93, %p94
      %p96 = scmp.ne.s32.totalorder %s85, %s88
      %p97 = scmp.eq.s32.totalorder %s29, 7
      %p98 = por %p96, %p97
      %p99 = scmp.ne.s32.totalorder %s88, %s89
      %p100 = scmp.eq.s32.totalorder %s29, 0
      %p101 = por %p99, %p100
      %p102 = scmp.ne.s32.totalorder %s88, %s89
      %p103 = scmp.eq.s32.totalorder %s30, 7
      %p104 = por %p102, %p103
      %p106 = scmp.ne.s32.totalorder %s89, %s105
      %p107 = scmp.eq.s32.totalorder %s30, 0
      %p108 = por %p106, %p107
      %s109 = ssub.s32 %s31, %s50
      %s110 = ssub.s32 %s32, %s46
      %s111 = sor.u32 %s109, %s110
      %p112 = scmp.eq.s32.totalorder %s111, 0
      %s114 = sadd.s32 %s113, 1
      %s115 = scalar_select %p112, %s113, %s114
      %p118 = pneg %p112
      %p119 = scmp.eq.s32.totalorder %s24, 7
      %p120 = por %p118, %p119
      %p121 = scmp.ne.s32.totalorder %s113, %s116
      %p122 = scmp.eq.s32.totalorder %s24, 0
      %p123 = por %p121, %p122
      %p124 = scmp.ne.s32.totalorder %s113, %s116
      %p125 = scmp.eq.s32.totalorder %s29, 7
      %p126 = por %p124, %p125
      %p127 = scmp.ne.s32.totalorder %s116, %s117
      %p128 = scmp.eq.s32.totalorder %s29, 0
      %p129 = por %p127, %p128
      %p130 = scmp.ne.s32.totalorder %s116, %s117
      %p131 = scmp.eq.s32.totalorder %s30, 7
      %p132 = por %p130, %p131
      %p134 = scmp.ne.s32.totalorder %s117, %s133
      %p135 = scmp.eq.s32.totalorder %s30, 0
      %p136 = por %p134, %p135
      %s137 = ssub.s32 %s33, %s42
      %p138 = scmp.eq.s32.totalorder %s137, 0
      %s140 = sadd.s32 %s139, 1
      %s141 = scalar_select %p138, %s139, %s140
      %p144 = pneg %p138
      %p145 = scmp.eq.s32.totalorder %s24, 7
      %p146 = por %p144, %p145
      %p147 = scmp.ne.s32.totalorder %s139, %s142
      %p148 = scmp.eq.s32.totalorder %s24, 0
      %p149 = por %p147, %p148
      %p150 = scmp.ne.s32.totalorder %s139, %s142
      %p151 = scmp.eq.s32.totalorder %s29, 7
      %p152 = por %p150, %p151
      %p153 = scmp.ne.s32.totalorder %s142, %s143
      %p154 = scmp.eq.s32.totalorder %s29, 0
      %p155 = por %p153, %p154
      %p156 = scmp.ne.s32.totalorder %s142, %s143
      %p157 = scmp.eq.s32.totalorder %s30, 7
      %p158 = por %p156, %p157
      %p160 = scmp.ne.s32.totalorder %s143, %s159
      %p161 = scmp.eq.s32.totalorder %s30, 0
      %p162 = por %p160, %p161
      %s163 = ssub.s32 %s31, %s50
      %s164 = ssub.s32 %s32, %s46
      %s165 = sor.u32 %s163, %s164
      %s166 = ssub.s32 %s33, %s42
      %s167 = sor.u32 %s165, %s166
      %p168 = scmp.eq.s32.totalorder %s167, 0
      %s170 = sadd.s32 %s169, 1
      %s171 = scalar_select %p168, %s169, %s170
      %p174 = pneg %p168
      %p175 = scmp.eq.s32.totalorder %s24, 7
      %p176 = por %p174, %p175
      %p177 = scmp.ne.s32.totalorder %s169, %s172
      %p178 = scmp.eq.s32.totalorder %s24, 0
      %p179 = por %p177, %p178
      %p180 = scmp.ne.s32.totalorder %s169, %s172
      %p181 = scmp.eq.s32.totalorder %s29, 7
      %p182 = por %p180, %p181
      %p183 = scmp.ne.s32.totalorder %s172, %s173
      %p184 = scmp.eq.s32.totalorder %s29, 0
      %p185 = por %p183, %p184
      %p186 = scmp.ne.s32.totalorder %s172, %s173
      %p187 = scmp.eq.s32.totalorder %s30, 7
      %p188 = por %p186, %p187
      %p190 = scmp.ne.s32.totalorder %s173, %s189
      %p191 = scmp.eq.s32.totalorder %s30, 0
      %p192 = por %p190, %p191
      %s193 = ssub.s32 %s31, %s50
      %s194 = ssub.s32 %s32, %s46
      %s195 = sor.u32 %s193, %s194
      %s196 = ssub.s32 %s33, %s42
      %s197 = sor.u32 %s195, %s196
      %p198 = scmp.eq.s32.totalorder %s197, 0
      %s200 = sadd.s32 %s199, 1
      %s201 = scalar_select %p198, %s199, %s200
      %p204 = pneg %p198
      %p205 = scmp.eq.s32.totalorder %s24, 7
      %p206 = por %p204, %p205
      %p207 = scmp.ne.s32.totalorder %s199, %s202
      %p208 = scmp.eq.s32.totalorder %s24, 0
      %p209 = por %p207, %p208
      %p210 = scmp.ne.s32.totalorder %s199, %s202
      %p211 = scmp.eq.s32.totalorder %s29, 7
      %p212 = por %p210, %p211
      %p213 = scmp.ne.s32.totalorder %s202, %s203
      %p214 = scmp.eq.s32.totalorder %s29, 0
      %p215 = por %p213, %p214
      %p216 = scmp.ne.s32.totalorder %s202, %s203
      %p217 = scmp.eq.s32.totalorder %s30, 7
      %p218 = por %p216, %p217
      %p220 = scmp.ne.s32.totalorder %s203, %s219
      %p221 = scmp.eq.s32.totalorder %s30, 0
      %p222 = por %p220, %p221
      %p223 = scmp.le.s32.totalorder 1, %s24
      %p224 = scmp.lt.s32.totalorder %s24, 9
      %p225 = pnand %p223, %p224
      %p226 = pneg %p225
      // Predicated region
      $region9: #{tpu_custom_call.1} parent=5 // pred_check
        _
      $region10: #{tpu_custom_call.1} parent=5 // pred_check_branch
        %228 = sbr.rel (%p225) target = $region12
      $region11: #{tpu_custom_call.1} parent=5 // pred_region
        %s229 = ssub.s32 %s24, 1
        // Predicated region
        $region13: #{tpu_custom_call.1} parent=11 // pred_check
          %p230 = pneg %p155
        $region14: #{tpu_custom_call.1} parent=11 // pred_check_branch
          %232 = sbr.rel (%p230) target = $region16
        $region15: #{tpu_custom_call.1} parent=11 // pred_region
          %p233 = scmp.lt.s32.totalorder %s36, 0
          %s234 = scalar_select %p233, %s36, 0
          %s235 = smul.addr %s234, 2
          %s236 = scalar_lea.vmem %s3, %s235
        $region16: #{tpu_custom_call.1} parent=11 // pred_fallthru
          _
      $region12: #{tpu_custom_call.1} parent=5 // pred_fallthru
        _
      %p237 = scmp.lt.s32.totalorder %s24, 8
      // Predicated region
      $region17: #{tpu_custom_call.1} parent=5 // pred_check
        %p238 = pneg %p237
      $region18: #{tpu_custom_call.1} parent=5 // pred_check_branch
        %240 = sbr.rel (%p238) target = $region20
      $region19: #{tpu_custom_call.1} parent=5 // pred_region
        // Predicated region
        $region21: #{tpu_custom_call.1} parent=19 // pred_check
          %p241 = pneg %p67
        $region22: #{tpu_custom_call.1} parent=19 // pred_check_branch
          %243 = sbr.rel (%p241) target = $region24
        $region23: #{tpu_custom_call.1} parent=19 // pred_region
          %s244 = sand.u32 %s57, 1
          %s245 = scalar_lea.sflag [#allocation3], %s244
          %s246 = sand.u32 %s57, 1
          %s247 = smul.addr %s246, 8
          %s248 = scalar_lea.vmem [#allocation2], %s247
          %250 = vsyncadd %s245, 0
          %s251 = sadd.s32 %s33, %s32
          %s252 = smul.addr %s31, 4
          %s253 = sadd.s32 %s251, %s252
          %s254 = smul.addr %s253, 8
          %s255 = scalar_lea.hbm %s0, %s254
          %s257 = sshll.u32 %s255, 4
          %s258 = int_to_ptr.hbm [resolvable:$true] %s257
          %s259 = sshll.u32 %s248, 4
          %s260 = int_to_ptr.vmem [resolvable:$true] %s259
          %262 = dma.hbm_to_vmem [thread:$0]  %s258, 128, %s260, %s245
        $region24: #{tpu_custom_call.1} parent=19 // pred_fallthru
          _
        // Predicated region
        $region25: #{tpu_custom_call.1} parent=19 // pred_check
          %p263 = pneg %p95
        $region26: #{tpu_custom_call.1} parent=19 // pred_check_branch
          %265 = sbr.rel (%p263) target = $region28
        $region27: #{tpu_custom_call.1} parent=19 // pred_region
          %s266 = sand.u32 %s24, 1
          %s267 = scalar_lea.sflag [#allocation6], %s266
          %s268 = sand.u32 %s85, 1
          %s269 = smul.addr %s268, 8
          %s270 = scalar_lea.vmem [#allocation5], %s269
          %272 = vsyncadd %s267, 0
          %s273 = smul.addr %s31, 4
          %s274 = sadd.s32 %s32, %s273
          %s275 = smul.addr %s274, 8
          %s276 = scalar_lea.hbm %s1, %s275
          %s278 = sshll.u32 %s276, 4
          %s279 = int_to_ptr.hbm [resolvable:$true] %s278
          %s280 = sshll.u32 %s270, 4
          %s281 = int_to_ptr.vmem [resolvable:$true] %s280
          %283 = dma.hbm_to_vmem [thread:$0]  %s279, 128, %s281, %s267
        $region28: #{tpu_custom_call.1} parent=19 // pred_fallthru
          _
        // Predicated region
        $region29: #{tpu_custom_call.1} parent=19 // pred_check
          %p284 = pneg %p123
        $region30: #{tpu_custom_call.1} parent=19 // pred_check_branch
          %286 = sbr.rel (%p284) target = $region32
        $region31: #{tpu_custom_call.1} parent=19 // pred_region
          %s287 = sand.u32 %s24, 1
          %s288 = scalar_lea.sflag [#allocation6], %s287
          %s289 = sand.u32 %s113, 1
          %s290 = smul.addr %s289, 8
          %s291 = scalar_lea.vmem [#allocation7], %s290
          %293 = vsyncadd %s288, 0
          %s294 = smul.addr %s31, 4
          %s295 = sadd.s32 %s32, %s294
          %s296 = smul.addr %s295, 8
          %s297 = scalar_lea.hbm %s2, %s296
          %s299 = sshll.u32 %s297, 4
          %s300 = int_to_ptr.hbm [resolvable:$true] %s299
          %s301 = sshll.u32 %s291, 4
          %s302 = int_to_ptr.vmem [resolvable:$true] %s301
          %304 = dma.hbm_to_vmem [thread:$0]  %s300, 128, %s302, %s288
        $region32: #{tpu_custom_call.1} parent=19 // pred_fallthru
          _
      $region20: #{tpu_custom_call.1} parent=5 // pred_fallthru
        _
      %p305 = scmp.le.s32.totalorder 1, %s24
      %p306 = scmp.lt.s32.totalorder %s24, 9
      %p307 = pnand %p305, %p306
      %p308 = pneg %p307
      // Predicated region
      $region33: #{tpu_custom_call.1} parent=5 // pred_check
        _
      $region34: #{tpu_custom_call.1} parent=5 // pred_check_branch
        %310 = sbr.rel (%p307) target = $region36
      $region35: #{tpu_custom_call.1} parent=5 // pred_region
        %s311 = ssub.s32 %s24, 1
        %s312 = sand.u32 %s60, 1
        %s313 = scalar_lea.sflag [#allocation3], %s312
        %s314 = sand.u32 %s60, 1
        %s315 = smul.addr %s314, 8
        %s316 = scalar_lea.vmem [#allocation2], %s315
        // Predicated region
        $region37: #{tpu_custom_call.1} parent=35 // pred_check
          %p317 = pneg %p73
        $region38: #{tpu_custom_call.1} parent=35 // pred_check_branch
          %319 = sbr.rel (%p317) target = $region40
        $region39: #{tpu_custom_call.1} parent=35 // pred_region
          %321 = dma.done %s313, 128
        $region40: #{tpu_custom_call.1} parent=35 // pred_fallthru
          _
        %s322 = sand.u32 %s29, 1
        %s323 = scalar_lea.sflag [#allocation6], %s322
        %s324 = sand.u32 %s88, 1
        %s325 = smul.addr %s324, 8
        %s326 = scalar_lea.vmem [#allocation5], %s325
        // Predicated region
        $region41: #{tpu_custom_call.1} parent=35 // pred_check
          %p327 = pneg %p101
        $region42: #{tpu_custom_call.1} parent=35 // pred_check_branch
          %329 = sbr.rel (%p327) target = $region44
        $region43: #{tpu_custom_call.1} parent=35 // pred_region
          %331 = dma.done %s323, 128
        $region44: #{tpu_custom_call.1} parent=35 // pred_fallthru
          _
        %s332 = sand.u32 %s29, 1
        %s333 = scalar_lea.sflag [#allocation6], %s332
        %s334 = sand.u32 %s116, 1
        %s335 = smul.addr %s334, 8
        %s336 = scalar_lea.vmem [#allocation7], %s335
        // Predicated region
        $region45: #{tpu_custom_call.1} parent=35 // pred_check
          %p337 = pneg %p129
        $region46: #{tpu_custom_call.1} parent=35 // pred_check_branch
          %339 = sbr.rel (%p337) target = $region48
        $region47: #{tpu_custom_call.1} parent=35 // pred_region
          %341 = dma.done %s333, 128
        $region48: #{tpu_custom_call.1} parent=35 // pred_fallthru
          _
        %s342 = sand.u32 %s60, 1
        %s343 = scalar_lea.sflag [#allocation3], %s342
        %s344 = sand.u32 %s60, 1
        %s345 = smul.addr %s344, 8
        %s346 = scalar_lea.vmem [#allocation2], %s345
        %p347 = pneg %p73
        %p348 = pneg %p70
        %s349 = sand.u32 %s29, 1
        %s350 = scalar_lea.sflag [#allocation6], %s349
        %s351 = sand.u32 %s88, 1
        %s352 = smul.addr %s351, 8
        %s353 = scalar_lea.vmem [#allocation5], %s352
        %p354 = pneg %p101
        %p355 = pneg %p98
        %s356 = sand.u32 %s29, 1
        %s357 = scalar_lea.sflag [#allocation6], %s356
        %s358 = sand.u32 %s116, 1
        %s359 = smul.addr %s358, 8
        %s360 = scalar_lea.vmem [#allocation7], %s359
        %p361 = pneg %p129
        %p362 = pneg %p126
        %p363 = scmp.lt.s32.totalorder %s36, 0
        %s364 = scalar_select %p363, %s36, 0
        %s365 = smul.addr %s364, 2
        %s366 = scalar_lea.vmem %s3, %s365
        %p367 = pneg %p155
        %p368 = pneg %p152
        %p369 = pneg %p185
        %p370 = pneg %p182
        %s371 = sand.u32 %s172, 1
        %s372 = scalar_lea.sflag [#allocation4], %s371
        %s373 = sand.u32 %s172, 1
        %s374 = smul.addr %s373, 8
        %s375 = scalar_lea.vmem [#allocation8], %s374
        %p376 = pneg %p215
        %p377 = pneg %p212
        %s378 = sand.u32 %s202, 1
        %s379 = scalar_lea.sflag [#allocation10], %s378
        %s380 = sand.u32 %s202, 1
        %s381 = smul.addr %s380, 8
        %s382 = scalar_lea.vmem [#allocation9], %s381
        %p383 = scmp.lt.s32.totalorder %s36, 0
        %s384 = scalar_select %p383, %s36, 0
        %s385 = smul.addr %s384, 2
        %s386 = scalar_lea.vmem %s3, %s385
        %v389 = vld [vmem:[%s316] sm:$0xff]
        %v390 = vld [vmem:[%s326] sm:$0xff]
        %v391 = vld [vmem:[%s336] sm:$0xff]
        %v392 = vld [vmem:[%s386] sm:$0x3]
        %vm393 = vcmask 261120
        %v395 = vsel %vm393, %v389, 0
        %v398 = vsel %vm393, %v390, 0
        %400 = vmatpush.xpose.msra.mxu0 0.0
        %401 = vmatpush.xpose.msra.mxu0 0.0
        %402 = vmatpush.xpose.msra.mxu0 0.0
        %403 = vmatpush.xpose.msra.mxu0 0.0
        %404 = vmatpush.xpose.msra.mxu0 0.0
        %405 = vmatpush.xpose.msra.mxu0 0.0
        %406 = vmatpush.xpose.msra.mxu0 0.0
        %407 = vmatpush.xpose.msra.mxu0 0.0
        %408 = vmatpush.xpose.msra.mxu0 0.0
        %409 = vmatpush.xpose.msra.mxu0 0.0
        %410 = vmatpush.xpose.msra.mxu0 0.0
        %411 = vmatpush.xpose.msra.mxu0 0.0
        %412 = vmatpush.xpose.msra.mxu0 0.0
        %413 = vmatpush.xpose.msra.mxu0 0.0
        %414 = vmatpush.xpose.msra.mxu0 0.0
        %415 = vmatpush.xpose.msra.mxu0 %v398
        %416 = vmatmul.f32.gmra.mxu0 %v395
        %v417 = vpop.f32.mrf.mxu0
        %v418 = vadd.f32 0.0, %v417
        %419 = vdwg.mxu0
        %v420 = vmul.f32 %v418, 0.17677669
        %vm421 = vnez %v392
        %v422 = vsel %vm421, 16843009, 0
        %v423 = vunpack.c.0.s8 %v422
        %vm424 = vcmp.ne.s32.totalorder %v423, 0
        %v425 = vsel %vm424, -1e+09, %v420
        %vm426 = vcmask 64512
        %v427 = vsel %vm426, %v425, -inf
        %428 = vmax.xlane.f32.xlu0 %v427
        %v429 = vpop.xlane.xlu0 %428
        %v430 = vsub.f32 %v425, %v429
        %v431 = vmul.f32 %v430, 1.442695
        %v432 = vpow.pop %v431
        %v433 = vsel %vm426, %v432, 0.0
        %434 = vadd.xlane.f32.xlu0 %v433
        %v435 = vpop.xlane.xlu0 %434
        %v436 = vrcp.pop %v435
        %v437 = vmul.f32 %v435, %v436
        %v438 = vsub.f32 1.0, %v437
        %v439 = vmul.f32 %v436, %v438
        %v440 = vadd.f32 %v436, %v439
        %vm441 = vweird.f32 %v435
        %vm442 = vweird.f32 %v436
        %vm443 = vmor %vm441, %vm442
        %v444 = vsel %vm443, %v436, %v440
        %v445 = vand.u32 2147483647, %v435
        %vm446 = vcmp.eq.f32.partialorder %v445, 8.507059e+37
        %v447 = vand.u32 %v435, 2147483648
        %v448 = vor.u32 1.1754944e-38, %v447
        %v449 = vsel %vm446, %v448, %v444
        %v450 = vmul.f32 %v432, %v449
        %451 = vst.msk [vmem:[%s382] sm:$0xff] %vm426, %v450
        %v453 = vsel %vm426, %v450, 0
        %455 = vmatpush.msra.mxu0 0.0
        %456 = vmatpush.msra.mxu0 0.0
        %457 = vmatpush.msra.mxu0 0.0
        %458 = vmatpush.msra.mxu0 0.0
        %459 = vmatpush.msra.mxu0 0.0
        %460 = vmatpush.msra.mxu0 0.0
        %461 = vmatpush.msra.mxu0 0.0
        %462 = vmatpush.msra.mxu0 0.0
        %463 = vmatpush.msra.mxu0 0.0
        %464 = vmatpush.msra.mxu0 0.0
        %465 = vmatpush.msra.mxu0 0.0
        %466 = vmatpush.msra.mxu0 0.0
        %467 = vmatpush.msra.mxu0 0.0
        %468 = vmatpush.msra.mxu0 0.0
        %469 = vmatpush.msra.mxu0 0.0
        %470 = vmatpush.msra.mxu0 %v391
        %471 = vmatmul.f32.gmra.mxu0 %v453
        %v472 = vpop.f32.mrf.mxu0
        %v473 = vadd.f32 0.0, %v472
        %474 = vdwg.mxu0
        %475 = vst.msk [vmem:[%s375] sm:$0xff] %vm393, %v473
        %s476 = sand.u32 %s172, 1
        %s477 = scalar_lea.sflag [#allocation4], %s476
        %s478 = sand.u32 %s172, 1
        %s479 = smul.addr %s478, 8
        %s480 = scalar_lea.vmem [#allocation8], %s479
        %s481 = sand.u32 %s202, 1
        %s482 = scalar_lea.sflag [#allocation10], %s481
        %s483 = sand.u32 %s202, 1
        %s484 = smul.addr %s483, 8
        %s485 = scalar_lea.vmem [#allocation9], %s484
        // Predicated region
        $region49: #{tpu_custom_call.1} parent=35 // pred_check
          %p486 = pneg %p182
        $region50: #{tpu_custom_call.1} parent=35 // pred_check_branch
          %488 = sbr.rel (%p486) target = $region52
        $region51: #{tpu_custom_call.1} parent=35 // pred_region
          %490 = vsyncadd %s477, 0
          %s491 = sadd.s32 %s36, %s35
          %s492 = smul.addr %s34, 4
          %s493 = sadd.s32 %s491, %s492
          %s494 = smul.addr %s493, 8
          %s495 = scalar_lea.hbm %s4, %s494
          %s497 = sshll.u32 %s480, 4
          %s498 = int_to_ptr.vmem [resolvable:$true] %s497
          %s499 = sshll.u32 %s495, 4
          %s500 = int_to_ptr.hbm [resolvable:$true] %s499
          %502 = dma.vmem_to_hbm [thread:$0]  %s498, 128, %s500, %s477
        $region52: #{tpu_custom_call.1} parent=35 // pred_fallthru
          _
        // Predicated region
        $region53: #{tpu_custom_call.1} parent=35 // pred_check
          %p503 = pneg %p212
        $region54: #{tpu_custom_call.1} parent=35 // pred_check_branch
          %505 = sbr.rel (%p503) target = $region56
        $region55: #{tpu_custom_call.1} parent=35 // pred_region
          %507 = vsyncadd %s482, 0
          %s508 = sadd.s32 %s36, %s35
          %s509 = smul.addr %s34, 4
          %s510 = sadd.s32 %s508, %s509
          %s511 = smul.addr %s510, 8
          %s512 = scalar_lea.hbm %s5, %s511
          %s514 = sshll.u32 %s485, 4
          %s515 = int_to_ptr.vmem [resolvable:$true] %s514
          %s516 = sshll.u32 %s512, 4
          %s517 = int_to_ptr.hbm [resolvable:$true] %s516
          %519 = dma.vmem_to_hbm [thread:$0]  %s515, 128, %s517, %s482
        $region56: #{tpu_custom_call.1} parent=35 // pred_fallthru
          _
      $region36: #{tpu_custom_call.1} parent=5 // pred_fallthru
        _
      %p520 = scmp.le.s32.totalorder 2, %s24
      // Predicated region
      $region57: #{tpu_custom_call.1} parent=5 // pred_check
        %p521 = pneg %p520
      $region58: #{tpu_custom_call.1} parent=5 // pred_check_branch
        %523 = sbr.rel (%p521) target = $region60
      $region59: #{tpu_custom_call.1} parent=5 // pred_region
        %s524 = ssub.s32 %s24, 2
        // Predicated region
        $region61: #{tpu_custom_call.1} parent=59 // pred_check
          %p525 = pneg %p188
        $region62: #{tpu_custom_call.1} parent=59 // pred_check_branch
          %527 = sbr.rel (%p525) target = $region64
        $region63: #{tpu_custom_call.1} parent=59 // pred_region
          %s528 = sand.u32 %s173, 1
          %s529 = scalar_lea.sflag [#allocation4], %s528
          %s530 = sand.u32 %s173, 1
          %s531 = smul.addr %s530, 8
          %s532 = scalar_lea.vmem [#allocation8], %s531
          %534 = dma.done %s529, 128
        $region64: #{tpu_custom_call.1} parent=59 // pred_fallthru
          _
        // Predicated region
        $region65: #{tpu_custom_call.1} parent=59 // pred_check
          %p535 = pneg %p218
        $region66: #{tpu_custom_call.1} parent=59 // pred_check_branch
          %537 = sbr.rel (%p535) target = $region68
        $region67: #{tpu_custom_call.1} parent=59 // pred_region
          %s538 = sand.u32 %s203, 1
          %s539 = scalar_lea.sflag [#allocation10], %s538
          %s540 = sand.u32 %s203, 1
          %s541 = smul.addr %s540, 8
          %s542 = scalar_lea.vmem [#allocation9], %s541
          %544 = dma.done %s539, 128
        $region68: #{tpu_custom_call.1} parent=59 // pred_fallthru
          _
      $region60: #{tpu_custom_call.1} parent=5 // pred_fallthru
        _
    $region6: #{tpu_custom_call.1} parent=1 // loop_footer
      %s28 = sadd.s32 1, %s24
    $region7: #{tpu_custom_call.1} parent=1 // loop_footer_branch
      %23 = sbr.rel target = $region3
    $region8: #{tpu_custom_call.1} parent=1 // loop_exit
      _
    %545 = vsyncpa [#allocation3], 1
    %s546 = scalar_lea.sflag [#allocation3], 1
    %547 = vsyncpa %s546, 1
    %548 = vsyncpa [#allocation6], 1
    %s549 = scalar_lea.sflag [#allocation6], 1
    %550 = vsyncpa %s549, 1
    %551 = vsyncpa [#allocation4], 1
    %s552 = scalar_lea.sflag [#allocation4], 1
    %553 = vsyncpa %s552, 1
    %554 = vsyncpa [#allocation10], 1
    %s555 = scalar_lea.sflag [#allocation10], 1
    %556 = vsyncpa %s555, 1

</llo_original>
